<compile_context>
chip_gen: v7x
topology: tpu7x:2x2x1
jax: 0.10.0
libtpu: 0.0.40
codegen_flags: <defaults>
</compile_context>

<pallas_src>
import functools

import jax
import jax.numpy as jnp
from jax.experimental import pallas as pl
from jax.experimental.pallas import tpu as pltpu

NUM_CLASSES = 365       # days in a year (PyTorch F.one_hot num_classes)
NUM_CLASSES_PAD = 384   # padded to 3*128 for clean lane/sublane tiling


def _abs_pos_enc_kernel(pos_ref, w_ref, b_ref, out_ref, *, pack):
    # pos_ref : (TMG, pack)            int32   -- `pack` positions per packed output row
    # w_ref   : (pack, 384, LANE_W)    compute dtype -- lane-placed (+repeat-tiled) weights
    # b_ref   : (1, LANE_W)            float32 -- lane-placed (+repeat-tiled) bias
    # out_ref : (TMG, LANE_W)          out dtype -- lane-dense packed output tile
    tmg = pos_ref.shape[0]
    # Hoisted iota shared by all `pack` sub-blocks (broadcasts are not CSE'd by JAX).
    classes = jax.lax.broadcasted_iota(jnp.int32, (tmg, NUM_CLASSES_PAD), 1)
    acc = jnp.zeros(out_ref.shape, jnp.float32)
    for p in range(pack):                                  # small static unrolled loop
        pos_p = pos_ref[:, p:p + 1]                        # (TMG, 1) int32
        one_hot = (pos_p == classes).astype(w_ref.dtype)   # (TMG, 384) VPU compare+convert
        # Lane-placed weight block: the result lands directly in lanes
        # [p*d_out:(p+1)*d_out]; the MXU/accumulator does the "concat" for free.
        acc = acc + jnp.dot(one_hot, w_ref[p],
                            preferred_element_type=jnp.float32)
    # Bias added once per tile; single full-width store.
    out_ref[...] = (acc + b_ref[...]).astype(out_ref.dtype)


def absolute_positional_encoder(batch_positions, w_t, bias, repeat=None, *,
                                max_packed_rows=1024, max_pack=8,
                                compute_dtype=jnp.float32,
                                out_dtype=jnp.float32):
    """batch_positions: (B, T) int. w_t: (365, D) = torch fc.weight.T. bias: (D,)."""
    b, t = batch_positions.shape
    d = w_t.shape[1]
    rep = 1 if repeat is None else int(repeat)
    d_out = d * rep
    n = b * t

    # Lane-dense packing: put `pack` consecutive logical rows side by side in lanes so the
    # output tile's last dim is a full 128-lane slab -> unmasked vector stores.
    pack = max(1, min(max_pack, 128 // d_out))
    lane_w = pack * d_out

    # --- grid / tile selection ------------------------------------------------------------
    g_needed = pl.cdiv(n, pack)                 # packed rows required
    g8 = pl.cdiv(g_needed, 8) * 8               # sublane-aligned packed row count
    steps = pl.cdiv(g8, max_packed_rows)        # big tiles: ~1024 packed rows per step
    if g8 >= 16:
        steps = max(steps, 2)                   # let the megacore split the grid
        if steps % 2 == 1:
            steps += 1                          # even step count: balanced on v7x's 2 TCs
    tmg = pl.cdiv(pl.cdiv(g8, steps), 8) * 8    # packed rows per grid step
    g_pad = pl.cdiv(g_needed, tmg) * tmg
    n_pad = g_pad * pack

    # --- operand prep (wrapper-side, one-time) ----------------------------------------------
    pos_flat = batch_positions.astype(jnp.int32).reshape(n)
    if n_pad != n:
        # Padded rows compute emb(day=0) and are sliced off below -- harmless.
        pos_flat = jnp.pad(pos_flat, (0, n_pad - n))
    pos_packed = pos_flat.reshape(g_pad, pack)  # free row-major reshape

    # Zero-pad class axis 365 -> 384 (3*128); positions < 365 never match the pad columns.
    w_pad = jnp.zeros((NUM_CLASSES_PAD, d), jnp.float32).at[:NUM_CLASSES].set(
        w_t.astype(jnp.float32))
    # Fold `repeat` into the weight/bias (replaces the in-kernel torch.cat).
    w_rep = jnp.tile(w_pad, (1, rep)) if rep > 1 else w_pad                    # (384, d_out)
    b_rep = (jnp.tile(bias.astype(jnp.float32), rep) if rep > 1
             else bias.astype(jnp.float32))                                    # (d_out,)
    w_rep = w_rep.astype(compute_dtype)
    # Lane-placed weight blocks: block p writes its result into lanes [p*d_out:(p+1)*d_out].
    if pack > 1:
        w_blocks = jnp.zeros((pack, NUM_CLASSES_PAD, lane_w), compute_dtype)
        for p in range(pack):
            w_blocks = w_blocks.at[p, :, p * d_out:(p + 1) * d_out].set(w_rep)
        b_lane = jnp.tile(b_rep, pack)
    else:
        w_blocks = w_rep[None]                                                 # (1, 384, d_out)
        b_lane = b_rep
    bias2d = b_lane.reshape(1, lane_w).astype(jnp.float32)

    kernel = functools.partial(_abs_pos_enc_kernel, pack=pack)
    out = pl.pallas_call(
        kernel,
        out_shape=jax.ShapeDtypeStruct((g_pad, lane_w), out_dtype),
        grid_spec=pltpu.PrefetchScalarGridSpec(
            num_scalar_prefetch=0,
            grid=(g_pad // tmg,),
            in_specs=[
                pl.BlockSpec((tmg, pack), lambda i: (i, 0)),                       # positions
                # Weight/bias are grid-invariant (constant index_map); they stay resident.
                pl.BlockSpec((pack, NUM_CLASSES_PAD, lane_w), lambda i: (0, 0, 0)),  # weights
                pl.BlockSpec((1, lane_w), lambda i: (0, 0)),                       # bias
            ],
            out_specs=pl.BlockSpec((tmg, lane_w), lambda i: (i, 0)),
        ),
        compiler_params=pltpu.CompilerParams(
            dimension_semantics=("parallel",)),
    )(pos_packed, w_blocks, bias2d)

    # (g_pad, pack*d_out) -> (n_pad, d_out) is a free row-major reshape (no transpose).
    pos_emb = out.reshape(n_pad, d_out)
    if n_pad != n:
        pos_emb = pos_emb[:n]
    return pos_emb.reshape(b, t, d_out)


def _reference(batch_positions, w_t, bias, repeat=None):
    one_hot = jax.nn.one_hot(batch_positions.astype(jnp.int32), NUM_CLASSES,
                             dtype=jnp.float32)
    pos_emb = jnp.einsum("btx,xd->btd", one_hot, w_t) + bias
    if repeat is not None:
        pos_emb = jnp.concatenate([pos_emb] * repeat, axis=-1)
    return pos_emb


if __name__ == "__main__":
    d_model = 32
    batch, seq = 2, 8

    key = jax.random.PRNGKey(0)
    k_pos, k_w, k_b = jax.random.split(key, 3)

    # nn.Linear(365, d_model): torch weight is (d_model, 365); we store its transpose.
    w_t = jax.random.normal(k_w, (NUM_CLASSES, d_model), dtype=jnp.float32) * 0.02
    bias = jax.random.normal(k_b, (d_model,), dtype=jnp.float32) * 0.02
    batch_positions = jax.random.randint(k_pos, (batch, seq), 0, NUM_CLASSES,
                                         dtype=jnp.int32)

    # f32 path: exact parity with the PyTorch reference.
    #   repeat=None -> pack=4, repeat=2 -> pack=2, repeat=4 -> pack=1 (128-wide output).
    for repeat in (None, 2, 4):
        out = absolute_positional_encoder(batch_positions, w_t, bias, repeat=repeat)
        out = jax.block_until_ready(out)
        ref = _reference(batch_positions, w_t, bias, repeat=repeat)
        assert out.shape == (batch, seq, d_model * (repeat or 1)), out.shape
        assert jnp.allclose(out, ref, atol=1e-5, rtol=1e-5), repeat

    # Larger input: exercises the multi-step, megacore-parallel grid path.
    pos_big = jax.random.randint(jax.random.PRNGKey(1), (4, 96), 0, NUM_CLASSES,
                                 dtype=jnp.int32)
    out_big = jax.block_until_ready(
        absolute_positional_encoder(pos_big, w_t, bias, repeat=None))
    ref_big = _reference(pos_big, w_t, bias, repeat=None)
    assert jnp.allclose(out_big, ref_big, atol=1e-5, rtol=1e-5)

    # Optional low-precision path (bf16 MXU inputs + bf16 writeback). Error is only the bf16
    # rounding of weights/output (accumulation is exact: one-hot selects a single weight row).
    out_bf16 = jax.block_until_ready(
        absolute_positional_encoder(batch_positions, w_t, bias, repeat=None,
                                    compute_dtype=jnp.bfloat16,
                                    out_dtype=jnp.bfloat16))
    ref32 = _reference(batch_positions, w_t, bias, repeat=None)
    assert jnp.allclose(out_bf16.astype(jnp.float32), ref32, atol=5e-3, rtol=5e-2)

    print("KERNEL_OK")
</pallas_src>

<mosaic_0001>
module attributes {stable_mosaic.version = 11 : i64} {
  func.func @_abs_pos_enc_kernel(%arg0: i32, %arg1: memref<8x4xi32, #tpu.memory_space<vmem>>, %arg2: memref<4x384x128xf32, #tpu.memory_space<vmem>>, %arg3: memref<1x128xf32, #tpu.memory_space<vmem>>, %arg4: memref<8x128xf32, #tpu.memory_space<vmem>>) attributes {dimension_semantics = [#tpu.dimension_semantics<parallel>], iteration_bounds = array<i64: 1>, scalar_prefetch = 0 : i64, scratch_operands = 0 : i64, tpu.core_type = #tpu.core_type<tc>, window_params = [{transform_indices = @transform_0, window_bounds = array<i64: 8, 4>}, {pipeline_mode = #tpu.pipeline_mode<synchronous>, transform_indices = @transform_1, window_bounds = array<i64: 4, 384, 128>}, {pipeline_mode = #tpu.pipeline_mode<synchronous>, transform_indices = @transform_2, window_bounds = array<i64: 1, 128>}, {transform_indices = @transform_3, window_bounds = array<i64: 8, 128>}]} {
    %0 = tpu.iota {dimensions = array<i32: 1>} : vector<8x384xi32>
    %cst = arith.constant 0.000000e+00 : f32
    %1 = vector.broadcast %cst : f32 to vector<8x128xf32>
    %c0 = arith.constant 0 : index
    %c0_0 = arith.constant 0 : index
    %2 = vector.load %arg1[%c0, %c0_0] : memref<8x4xi32, #tpu.memory_space<vmem>>, vector<8x1xi32>
    %3 = vector.broadcast %2 : vector<8x1xi32> to vector<8x384xi32>
    %4 = arith.cmpi eq, %3, %0 : vector<8x384xi32>
    %5 = arith.extui %4 : vector<8x384xi1> to vector<8x384xi32>
    %6 = arith.sitofp %5 : vector<8x384xi32> to vector<8x384xf32>
    %c0_1 = arith.constant 0 : index
    %c0_2 = arith.constant 0 : index
    %c0_3 = arith.constant 0 : index
    %7 = vector.load %arg2[%c0_1, %c0_2, %c0_3] : memref<4x384x128xf32, #tpu.memory_space<vmem>>, vector<1x384x128xf32>
    %8 = vector.shape_cast %7 : vector<1x384x128xf32> to vector<384x128xf32>
    %cst_4 = arith.constant dense<0.000000e+00> : vector<8x128xf32>
    %9 = tpu.matmul %6, %8, %cst_4 {dimension_numbers = #tpu.dot_dimension_numbers<[1], [0], [0], [1], [0, 0, 1, 1], [], []>} : vector<8x384xf32>, vector<384x128xf32>, vector<8x128xf32> -> vector<8x128xf32>
    %10 = arith.addf %1, %9 : vector<8x128xf32>
    %c0_5 = arith.constant 0 : index
    %c1 = arith.constant 1 : index
    %11 = vector.load %arg1[%c0_5, %c1] : memref<8x4xi32, #tpu.memory_space<vmem>>, vector<8x1xi32>
    %12 = vector.broadcast %11 : vector<8x1xi32> to vector<8x384xi32>
    %13 = arith.cmpi eq, %12, %0 : vector<8x384xi32>
    %14 = arith.extui %13 : vector<8x384xi1> to vector<8x384xi32>
    %15 = arith.sitofp %14 : vector<8x384xi32> to vector<8x384xf32>
    %c1_6 = arith.constant 1 : index
    %c0_7 = arith.constant 0 : index
    %c0_8 = arith.constant 0 : index
    %16 = vector.load %arg2[%c1_6, %c0_7, %c0_8] : memref<4x384x128xf32, #tpu.memory_space<vmem>>, vector<1x384x128xf32>
    %17 = vector.shape_cast %16 : vector<1x384x128xf32> to vector<384x128xf32>
    %cst_9 = arith.constant dense<0.000000e+00> : vector<8x128xf32>
    %18 = tpu.matmul %15, %17, %cst_9 {dimension_numbers = #tpu.dot_dimension_numbers<[1], [0], [0], [1], [0, 0, 1, 1], [], []>} : vector<8x384xf32>, vector<384x128xf32>, vector<8x128xf32> -> vector<8x128xf32>
    %19 = arith.addf %10, %18 : vector<8x128xf32>
    %c0_10 = arith.constant 0 : index
    %c2 = arith.constant 2 : index
    %20 = vector.load %arg1[%c0_10, %c2] : memref<8x4xi32, #tpu.memory_space<vmem>>, vector<8x1xi32>
    %21 = vector.broadcast %20 : vector<8x1xi32> to vector<8x384xi32>
    %22 = arith.cmpi eq, %21, %0 : vector<8x384xi32>
    %23 = arith.extui %22 : vector<8x384xi1> to vector<8x384xi32>
    %24 = arith.sitofp %23 : vector<8x384xi32> to vector<8x384xf32>
    %c2_11 = arith.constant 2 : index
    %c0_12 = arith.constant 0 : index
    %c0_13 = arith.constant 0 : index
    %25 = vector.load %arg2[%c2_11, %c0_12, %c0_13] : memref<4x384x128xf32, #tpu.memory_space<vmem>>, vector<1x384x128xf32>
    %26 = vector.shape_cast %25 : vector<1x384x128xf32> to vector<384x128xf32>
    %cst_14 = arith.constant dense<0.000000e+00> : vector<8x128xf32>
    %27 = tpu.matmul %24, %26, %cst_14 {dimension_numbers = #tpu.dot_dimension_numbers<[1], [0], [0], [1], [0, 0, 1, 1], [], []>} : vector<8x384xf32>, vector<384x128xf32>, vector<8x128xf32> -> vector<8x128xf32>
    %28 = arith.addf %19, %27 : vector<8x128xf32>
    %c0_15 = arith.constant 0 : index
    %c3 = arith.constant 3 : index
    %29 = vector.load %arg1[%c0_15, %c3] : memref<8x4xi32, #tpu.memory_space<vmem>>, vector<8x1xi32>
    %30 = vector.broadcast %29 : vector<8x1xi32> to vector<8x384xi32>
    %31 = arith.cmpi eq, %30, %0 : vector<8x384xi32>
    %32 = arith.extui %31 : vector<8x384xi1> to vector<8x384xi32>
    %33 = arith.sitofp %32 : vector<8x384xi32> to vector<8x384xf32>
    %c3_16 = arith.constant 3 : index
    %c0_17 = arith.constant 0 : index
    %c0_18 = arith.constant 0 : index
    %34 = vector.load %arg2[%c3_16, %c0_17, %c0_18] : memref<4x384x128xf32, #tpu.memory_space<vmem>>, vector<1x384x128xf32>
    %35 = vector.shape_cast %34 : vector<1x384x128xf32> to vector<384x128xf32>
    %cst_19 = arith.constant dense<0.000000e+00> : vector<8x128xf32>
    %36 = tpu.matmul %33, %35, %cst_19 {dimension_numbers = #tpu.dot_dimension_numbers<[1], [0], [0], [1], [0, 0, 1, 1], [], []>} : vector<8x384xf32>, vector<384x128xf32>, vector<8x128xf32> -> vector<8x128xf32>
    %37 = arith.addf %28, %36 : vector<8x128xf32>
    %c0_20 = arith.constant 0 : index
    %c0_21 = arith.constant 0 : index
    %38 = vector.load %arg3[%c0_20, %c0_21] : memref<1x128xf32, #tpu.memory_space<vmem>>, vector<1x128xf32>
    %39 = vector.broadcast %38 : vector<1x128xf32> to vector<8x128xf32>
    %40 = arith.addf %37, %39 : vector<8x128xf32>
    %c0_22 = arith.constant 0 : index
    %c0_23 = arith.constant 0 : index
    %41 = vector.load %arg4[%c0_22, %c0_23] : memref<8x128xf32, #tpu.memory_space<vmem>>, vector<8x128xf32>
    tpu.vector_store %arg4[%c0_22, %c0_23], %40 {strides = array<i32>} : memref<8x128xf32, #tpu.memory_space<vmem>>, vector<8x128xf32>,
    return
  }
  func.func @transform_0(%arg0: i32) -> (i32, i32) {
    %c0_i32 = arith.constant 0 : i32
    %c0_i32_0 = arith.constant 0 : i32
    return %arg0, %c0_i32 : i32, i32
  }
  func.func @transform_1(%arg0: i32) -> (i32, i32, i32) {
    %c0_i32 = arith.constant 0 : i32
    %c0_i32_0 = arith.constant 0 : i32
    %c0_i32_1 = arith.constant 0 : i32
    %c0_i32_2 = arith.constant 0 : i32
    return %c0_i32, %c0_i32_0, %c0_i32_1 : i32, i32, i32
  }
  func.func @transform_2(%arg0: i32) -> (i32, i32) {
    %c0_i32 = arith.constant 0 : i32
    %c0_i32_0 = arith.constant 0 : i32
    %c0_i32_1 = arith.constant 0 : i32
    return %c0_i32, %c0_i32_0 : i32, i32
  }
  func.func @transform_3(%arg0: i32) -> (i32, i32) {
    %c0_i32 = arith.constant 0 : i32
    %c0_i32_0 = arith.constant 0 : i32
    return %arg0, %c0_i32 : i32, i32
  }
}

</mosaic_0001>

<llo_original>
// kernel: tpu_custom_call.1
$region0: #{tpu_custom_call.1}
  #allocation0 [shape = 'u32[]', space=smem, size = 0x4, offset = 0x4, fixed_abs, tag = 'smem constant byte address 0x4 - core index']
  #allocation1 [shape = 'u32[144,128]{1,0:T(1,128)}', space=vmem, size = 0x12000, scoped, tag = 'internal scratch']
  %s0 = inlined_call_operand.vmem [shape: s32[8,4], index: 0, kind: input, shape index: {}]
  %s1 = inlined_call_operand.hbm [shape: f32[4,384,128], index: 1, kind: input, shape index: {}]
  %s2 = inlined_call_operand.vmem [shape: f32[1,128], index: 2, kind: input, shape index: {}]
  %s3 = inlined_call_operand.hbm [shape: f32[8,128], index: 3, kind: output, shape index: {}]
  %s4 = sld [smem:[#allocation0]]
  $region26: #{tpu_custom_call.1} parent=0
    _
  %s6 = ssub.s32 1, %s4
  %s7 = scalar_select 0, %s6, %s4
  $region1: #{tpu_custom_call.1} parent=0
    #allocation2 [shape = 'u8[786432]{0}', space=vmem, size = 0xc0000, scoped, tag = 'input window, operand 1, single buffered']
    #allocation3 [shape = 's32[1]{0}', space=sflag, size = 0x4, scoped, tag = 'scoped memory for tpu_custom_call.1']
    #allocation4 [shape = 's32[1]{0}', space=sflag, size = 0x4, scoped, tag = 'scoped memory for tpu_custom_call.1']
    #allocation5 [shape = 'u8[4096]{0}', space=vmem, size = 0x1000, scoped, tag = 'output window, operand 0, single buffered']
    %8 = vsyncpa [#allocation3], 0
    %9 = vsyncpa [#allocation4], 0
    // Predicated region
    $region2: #{tpu_custom_call.1} parent=1 // pred_check
      _
    $region3: #{tpu_custom_call.1} parent=1 // pred_check_branch
      %11 = sbr.rel (0) target = $region5
    $region4: #{tpu_custom_call.1} parent=1 // pred_region
      _
    $region5: #{tpu_custom_call.1} parent=1 // pred_fallthru
      _
    // Predicated region
    $region6: #{tpu_custom_call.1} parent=1 // pred_check
      _
    $region7: #{tpu_custom_call.1} parent=1 // pred_check_branch
      %13 = sbr.rel (0) target = $region9
    $region8: #{tpu_custom_call.1} parent=1 // pred_region
      %s15 = ssub.s32 24576, 24576
      %16 = vsyncadd [#allocation3], %s15
      %s17 = sshll.u32 [#allocation2], 4
      %s18 = int_to_ptr.vmem [resolvable:$true] %s17
      %23 = dma.hbm_to_vmem [thread:$0]  %s1, 24576, %s18, [#allocation3], 128, 128, 8
    $region9: #{tpu_custom_call.1} parent=1 // pred_fallthru
      _
    // Predicated region
    $region10: #{tpu_custom_call.1} parent=1 // pred_check
      _
    $region11: #{tpu_custom_call.1} parent=1 // pred_check_branch
      %25 = sbr.rel (0) target = $region13
    $region12: #{tpu_custom_call.1} parent=1 // pred_region
      _
    $region13: #{tpu_custom_call.1} parent=1 // pred_fallthru
      _
    // Predicated region
    $region14: #{tpu_custom_call.1} parent=1 // pred_check
      _
    $region15: #{tpu_custom_call.1} parent=1 // pred_check_branch
      %27 = sbr.rel (0) target = $region17
    $region16: #{tpu_custom_call.1} parent=1 // pred_region
      %28 = dma.done [#allocation3], 24576
    $region17: #{tpu_custom_call.1} parent=1 // pred_fallthru
      _
    %v29 = vlaneseq
    %v30 = vand.u32 %v29, 127
    %v31 = vadd.s32 %v30, 128
    %v32 = vadd.s32 %v30, 256
    %v33 = vld [vmem:[%s0] sm:$0xff]
    %34 = vset.pattern.permute.xlu0 0
    %35 = vperm.xlu0 %34, %v33
    %v36 = vpop.permute.xlu0 %35
    %vm37 = vcmp.eq.s32.totalorder %v36, %v30
    %vm38 = vcmp.eq.s32.totalorder %v36, %v31
    %vm39 = vcmp.eq.s32.totalorder %v36, %v32
    %v40 = vsel %vm37, 1, 0
    %v41 = vsel %vm38, 1, 0
    %v42 = vsel %vm39, 1, 0
    %v43 = vcvt.s32.f32 %v40
    %v44 = vcvt.s32.f32 %v41
    %v45 = vcvt.s32.f32 %v42
    %v46 = vld [vmem:[#allocation2] sm:$0xff]
    %v47 = vld [vmem:[#allocation2 + $0x8] sm:$0xff]
    %v48 = vld [vmem:[#allocation2 + $0x10] sm:$0xff]
    %v49 = vld [vmem:[#allocation2 + $0x18] sm:$0xff]
    %v50 = vld [vmem:[#allocation2 + $0x20] sm:$0xff]
    %v51 = vld [vmem:[#allocation2 + $0x28] sm:$0xff]
    %v52 = vld [vmem:[#allocation2 + $0x30] sm:$0xff]
    %v53 = vld [vmem:[#allocation2 + $0x38] sm:$0xff]
    %v54 = vld [vmem:[#allocation2 + $0x40] sm:$0xff]
    %v55 = vld [vmem:[#allocation2 + $0x48] sm:$0xff]
    %v56 = vld [vmem:[#allocation2 + $0x50] sm:$0xff]
    %v57 = vld [vmem:[#allocation2 + $0x58] sm:$0xff]
    %v58 = vld [vmem:[#allocation2 + $0x60] sm:$0xff]
    %v59 = vld [vmem:[#allocation2 + $0x68] sm:$0xff]
    %v60 = vld [vmem:[#allocation2 + $0x70] sm:$0xff]
    %v61 = vld [vmem:[#allocation2 + $0x78] sm:$0xff]
    %v62 = vld [vmem:[#allocation2 + $0x80] sm:$0xff]
    %v63 = vld [vmem:[#allocation2 + $0x88] sm:$0xff]
    %v64 = vld [vmem:[#allocation2 + $0x90] sm:$0xff]
    %v65 = vld [vmem:[#allocation2 + $0x98] sm:$0xff]
    %v66 = vld [vmem:[#allocation2 + $0xa0] sm:$0xff]
    %v67 = vld [vmem:[#allocation2 + $0xa8] sm:$0xff]
    %v68 = vld [vmem:[#allocation2 + $0xb0] sm:$0xff]
    %v69 = vld [vmem:[#allocation2 + $0xb8] sm:$0xff]
    %v70 = vld [vmem:[#allocation2 + $0xc0] sm:$0xff]
    %v71 = vld [vmem:[#allocation2 + $0xc8] sm:$0xff]
    %v72 = vld [vmem:[#allocation2 + $0xd0] sm:$0xff]
    %v73 = vld [vmem:[#allocation2 + $0xd8] sm:$0xff]
    %v74 = vld [vmem:[#allocation2 + $0xe0] sm:$0xff]
    %v75 = vld [vmem:[#allocation2 + $0xe8] sm:$0xff]
    %v76 = vld [vmem:[#allocation2 + $0xf0] sm:$0xff]
    %v77 = vld [vmem:[#allocation2 + $0xf8] sm:$0xff]
    %v78 = vld [vmem:[#allocation2 + $0x100] sm:$0xff]
    %v79 = vld [vmem:[#allocation2 + $0x108] sm:$0xff]
    %v80 = vld [vmem:[#allocation2 + $0x110] sm:$0xff]
    %v81 = vld [vmem:[#allocation2 + $0x118] sm:$0xff]
    %v82 = vld [vmem:[#allocation2 + $0x120] sm:$0xff]
    %v83 = vld [vmem:[#allocation2 + $0x128] sm:$0xff]
    %v84 = vld [vmem:[#allocation2 + $0x130] sm:$0xff]
    %v85 = vld [vmem:[#allocation2 + $0x138] sm:$0xff]
    %v86 = vld [vmem:[#allocation2 + $0x140] sm:$0xff]
    %v87 = vld [vmem:[#allocation2 + $0x148] sm:$0xff]
    %v88 = vld [vmem:[#allocation2 + $0x150] sm:$0xff]
    %v89 = vld [vmem:[#allocation2 + $0x158] sm:$0xff]
    %v90 = vld [vmem:[#allocation2 + $0x160] sm:$0xff]
    %v91 = vld [vmem:[#allocation2 + $0x168] sm:$0xff]
    %v92 = vld [vmem:[#allocation2 + $0x170] sm:$0xff]
    %v93 = vld [vmem:[#allocation2 + $0x178] sm:$0xff]
    %94 = vset.pattern.permute.xlu0 1
    %95 = vperm.xlu0 %94, %v33
    %v96 = vpop.permute.xlu0 %95
    %vm97 = vcmp.eq.s32.totalorder %v96, %v30
    %vm98 = vcmp.eq.s32.totalorder %v96, %v31
    %vm99 = vcmp.eq.s32.totalorder %v96, %v32
    %v100 = vsel %vm97, 1, 0
    %v101 = vsel %vm98, 1, 0
    %v102 = vsel %vm99, 1, 0
    %v103 = vcvt.s32.f32 %v100
    %v104 = vcvt.s32.f32 %v101
    %v105 = vcvt.s32.f32 %v102
    %s106 = scalar_lea.vmem [#allocation2], 384
    %v107 = vld [vmem:[%s106] sm:$0xff]
    %v108 = vld [vmem:[%s106 + $0x8] sm:$0xff]
    %v109 = vld [vmem:[%s106 + $0x10] sm:$0xff]
    %v110 = vld [vmem:[%s106 + $0x18] sm:$0xff]
    %v111 = vld [vmem:[%s106 + $0x20] sm:$0xff]
    %v112 = vld [vmem:[%s106 + $0x28] sm:$0xff]
    %v113 = vld [vmem:[%s106 + $0x30] sm:$0xff]
    %v114 = vld [vmem:[%s106 + $0x38] sm:$0xff]
    %v115 = vld [vmem:[%s106 + $0x40] sm:$0xff]
    %v116 = vld [vmem:[%s106 + $0x48] sm:$0xff]
    %v117 = vld [vmem:[%s106 + $0x50] sm:$0xff]
    %v118 = vld [vmem:[%s106 + $0x58] sm:$0xff]
    %v119 = vld [vmem:[%s106 + $0x60] sm:$0xff]
    %v120 = vld [vmem:[%s106 + $0x68] sm:$0xff]
    %v121 = vld [vmem:[%s106 + $0x70] sm:$0xff]
    %v122 = vld [vmem:[%s106 + $0x78] sm:$0xff]
    %v123 = vld [vmem:[%s106 + $0x80] sm:$0xff]
    %v124 = vld [vmem:[%s106 + $0x88] sm:$0xff]
    %v125 = vld [vmem:[%s106 + $0x90] sm:$0xff]
    %v126 = vld [vmem:[%s106 + $0x98] sm:$0xff]
    %v127 = vld [vmem:[%s106 + $0xa0] sm:$0xff]
    %v128 = vld [vmem:[%s106 + $0xa8] sm:$0xff]
    %v129 = vld [vmem:[%s106 + $0xb0] sm:$0xff]
    %v130 = vld [vmem:[%s106 + $0xb8] sm:$0xff]
    %v131 = vld [vmem:[%s106 + $0xc0] sm:$0xff]
    %v132 = vld [vmem:[%s106 + $0xc8] sm:$0xff]
    %v133 = vld [vmem:[%s106 + $0xd0] sm:$0xff]
    %v134 = vld [vmem:[%s106 + $0xd8] sm:$0xff]
    %v135 = vld [vmem:[%s106 + $0xe0] sm:$0xff]
    %v136 = vld [vmem:[%s106 + $0xe8] sm:$0xff]
    %v137 = vld [vmem:[%s106 + $0xf0] sm:$0xff]
    %v138 = vld [vmem:[%s106 + $0xf8] sm:$0xff]
    %v139 = vld [vmem:[%s106 + $0x100] sm:$0xff]
    %v140 = vld [vmem:[%s106 + $0x108] sm:$0xff]
    %v141 = vld [vmem:[%s106 + $0x110] sm:$0xff]
    %v142 = vld [vmem:[%s106 + $0x118] sm:$0xff]
    %v143 = vld [vmem:[%s106 + $0x120] sm:$0xff]
    %v144 = vld [vmem:[%s106 + $0x128] sm:$0xff]
    %v145 = vld [vmem:[%s106 + $0x130] sm:$0xff]
    %v146 = vld [vmem:[%s106 + $0x138] sm:$0xff]
    %v147 = vld [vmem:[%s106 + $0x140] sm:$0xff]
    %v148 = vld [vmem:[%s106 + $0x148] sm:$0xff]
    %v149 = vld [vmem:[%s106 + $0x150] sm:$0xff]
    %v150 = vld [vmem:[%s106 + $0x158] sm:$0xff]
    %v151 = vld [vmem:[%s106 + $0x160] sm:$0xff]
    %v152 = vld [vmem:[%s106 + $0x168] sm:$0xff]
    %v153 = vld [vmem:[%s106 + $0x170] sm:$0xff]
    %v154 = vld [vmem:[%s106 + $0x178] sm:$0xff]
    %155 = vmatprep.subr.mxu0 0.0
    %156 = vmatpush1.msra.mxu0 %v107
    %157 = vmatprep.subr.mxu0 0.0
    %158 = vmatpush1.msra.mxu0 %v108
    %159 = vmatprep.subr.mxu0 0.0
    %160 = vmatpush1.msra.mxu0 %v109
    %161 = vmatprep.subr.mxu0 0.0
    %162 = vmatpush1.msra.mxu0 %v110
    %163 = vmatprep.subr.mxu0 0.0
    %164 = vmatpush1.msra.mxu0 %v111
    %165 = vmatprep.subr.mxu0 0.0
    %166 = vmatpush1.msra.mxu0 %v112
    %167 = vmatprep.subr.mxu0 0.0
    %168 = vmatpush1.msra.mxu0 %v113
    %169 = vmatprep.subr.mxu0 0.0
    %170 = vmatpush1.msra.mxu0 %v114
    %171 = vmatprep.subr.mxu0 0.0
    %172 = vmatpush1.msra.mxu0 %v115
    %173 = vmatprep.subr.mxu0 0.0
    %174 = vmatpush1.msra.mxu0 %v116
    %175 = vmatprep.subr.mxu0 0.0
    %176 = vmatpush1.msra.mxu0 %v117
    %177 = vmatprep.subr.mxu0 0.0
    %178 = vmatpush1.msra.mxu0 %v118
    %179 = vmatprep.subr.mxu0 0.0
    %180 = vmatpush1.msra.mxu0 %v119
    %181 = vmatprep.subr.mxu0 0.0
    %182 = vmatpush1.msra.mxu0 %v120
    %183 = vmatprep.subr.mxu0 0.0
    %184 = vmatpush1.msra.mxu0 %v121
    %185 = vmatprep.subr.mxu0 0.0
    %186 = vmatpush1.msra.mxu0 %v122
    %187 = vmatprep.subr.mxu0 0.0
    %188 = vmatpush1.msra.mxu0 %v123
    %189 = vmatprep.subr.mxu0 0.0
    %190 = vmatpush1.msra.mxu0 %v124
    %191 = vmatprep.subr.mxu0 0.0
    %192 = vmatpush1.msra.mxu0 %v125
    %193 = vmatprep.subr.mxu0 0.0
    %194 = vmatpush1.msra.mxu0 %v126
    %195 = vmatprep.subr.mxu0 0.0
    %196 = vmatpush1.msra.mxu0 %v127
    %197 = vmatprep.subr.mxu0 0.0
    %198 = vmatpush1.msra.mxu0 %v128
    %199 = vmatprep.subr.mxu0 0.0
    %200 = vmatpush1.msra.mxu0 %v129
    %201 = vmatprep.subr.mxu0 0.0
    %202 = vmatpush1.msra.mxu0 %v130
    %203 = vmatprep.subr.mxu0 0.0
    %204 = vmatpush1.msra.mxu0 %v131
    %205 = vmatprep.subr.mxu0 0.0
    %206 = vmatpush1.msra.mxu0 %v132
    %207 = vmatprep.subr.mxu0 0.0
    %208 = vmatpush1.msra.mxu0 %v133
    %209 = vmatprep.subr.mxu0 0.0
    %210 = vmatpush1.msra.mxu0 %v134
    %211 = vmatprep.subr.mxu0 0.0
    %212 = vmatpush1.msra.mxu0 %v135
    %213 = vmatprep.subr.mxu0 0.0
    %214 = vmatpush1.msra.mxu0 %v136
    %215 = vmatprep.subr.mxu0 0.0
    %216 = vmatpush1.msra.mxu0 %v137
    %217 = vmatprep.subr.mxu0 0.0
    %218 = vmatpush1.msra.mxu0 %v138
    %219 = vmatprep.mubr.f32.mxu0 %v104
    %220 = vmatmul.mubr.f32.gmra.mrb[0].mxu0 %v103
    %v221 = vpop.f32.mrb[0].mxu0
    %v222 = vadd.f32 0.0, %v221
    %v223 = vpop.f32.mrb[0].mxu0
    %224 = vdwg.mxu0
    %225 = vmatprep.subr.mxu0 0.0
    %226 = vmatpush1.msra.mxu0 %v139
    %227 = vmatprep.subr.mxu0 0.0
    %228 = vmatpush1.msra.mxu0 %v140
    %229 = vmatprep.subr.mxu0 0.0
    %230 = vmatpush1.msra.mxu0 %v141
    %231 = vmatprep.subr.mxu0 0.0
    %232 = vmatpush1.msra.mxu0 %v142
    %233 = vmatprep.subr.mxu0 0.0
    %234 = vmatpush1.msra.mxu0 %v143
    %235 = vmatprep.subr.mxu0 0.0
    %236 = vmatpush1.msra.mxu0 %v144
    %237 = vmatprep.subr.mxu0 0.0
    %238 = vmatpush1.msra.mxu0 %v145
    %239 = vmatprep.subr.mxu0 0.0
    %240 = vmatpush1.msra.mxu0 %v146
    %241 = vmatprep.subr.mxu0 0.0
    %242 = vmatpush1.msra.mxu0 %v147
    %243 = vmatprep.subr.mxu0 0.0
    %244 = vmatpush1.msra.mxu0 %v148
    %245 = vmatprep.subr.mxu0 0.0
    %246 = vmatpush1.msra.mxu0 %v149
    %247 = vmatprep.subr.mxu0 0.0
    %248 = vmatpush1.msra.mxu0 %v150
    %249 = vmatprep.subr.mxu0 0.0
    %250 = vmatpush1.msra.mxu0 %v151
    %251 = vmatprep.subr.mxu0 0.0
    %252 = vmatpush1.msra.mxu0 %v152
    %253 = vmatprep.subr.mxu0 0.0
    %254 = vmatpush1.msra.mxu0 %v153
    %255 = vmatprep.subr.mxu0 0.0
    %256 = vmatpush1.msra.mxu0 %v154
    %257 = vmatprep.subr.mxu0 0.0
    %258 = vmatpush1.msra.mxu0 0.0
    %259 = vmatprep.subr.mxu0 0.0
    %260 = vmatpush1.msra.mxu0 0.0
    %261 = vmatprep.subr.mxu0 0.0
    %262 = vmatpush1.msra.mxu0 0.0
    %263 = vmatprep.subr.mxu0 0.0
    %264 = vmatpush1.msra.mxu0 0.0
    %265 = vmatprep.subr.mxu0 0.0
    %266 = vmatpush1.msra.mxu0 0.0
    %267 = vmatprep.subr.mxu0 0.0
    %268 = vmatpush1.msra.mxu0 0.0
    %269 = vmatprep.subr.mxu0 0.0
    %270 = vmatpush1.msra.mxu0 0.0
    %271 = vmatprep.subr.mxu0 0.0
    %272 = vmatpush1.msra.mxu0 0.0
    %273 = vmatprep.subr.mxu0 0.0
    %274 = vmatpush1.msra.mxu0 0.0
    %275 = vmatprep.subr.mxu0 0.0
    %276 = vmatpush1.msra.mxu0 0.0
    %277 = vmatprep.subr.mxu0 0.0
    %278 = vmatpush1.msra.mxu0 0.0
    %279 = vmatprep.subr.mxu0 0.0
    %280 = vmatpush1.msra.mxu0 0.0
    %281 = vmatprep.subr.mxu0 0.0
    %282 = vmatpush1.msra.mxu0 0.0
    %283 = vmatprep.subr.mxu0 0.0
    %284 = vmatpush1.msra.mxu0 0.0
    %285 = vmatprep.subr.mxu0 0.0
    %286 = vmatpush1.msra.mxu0 0.0
    %287 = vmatprep.subr.mxu0 0.0
    %288 = vmatpush1.msra.mxu0 0.0
    %289 = vmatprep.mubr.f32.mxu0 0.0
    %290 = vmatmul.mubr.f32.gmra.mrb[0].mxu0 %v105
    %v291 = vpop.f32.mrb[0].mxu0
    %v292 = vadd.f32 %v222, %v291
    %v293 = vpop.f32.mrb[0].mxu0
    %294 = vdwg.mxu0
    %295 = vmatprep.subr.mxu0 0.0
    %296 = vmatpush1.msra.mxu0 %v46
    %297 = vmatprep.subr.mxu0 0.0
    %298 = vmatpush1.msra.mxu0 %v47
    %299 = vmatprep.subr.mxu0 0.0
    %300 = vmatpush1.msra.mxu0 %v48
    %301 = vmatprep.subr.mxu0 0.0
    %302 = vmatpush1.msra.mxu0 %v49
    %303 = vmatprep.subr.mxu0 0.0
    %304 = vmatpush1.msra.mxu0 %v50
    %305 = vmatprep.subr.mxu0 0.0
    %306 = vmatpush1.msra.mxu0 %v51
    %307 = vmatprep.subr.mxu0 0.0
    %308 = vmatpush1.msra.mxu0 %v52
    %309 = vmatprep.subr.mxu0 0.0
    %310 = vmatpush1.msra.mxu0 %v53
    %311 = vmatprep.subr.mxu0 0.0
    %312 = vmatpush1.msra.mxu0 %v54
    %313 = vmatprep.subr.mxu0 0.0
    %314 = vmatpush1.msra.mxu0 %v55
    %315 = vmatprep.subr.mxu0 0.0
    %316 = vmatpush1.msra.mxu0 %v56
    %317 = vmatprep.subr.mxu0 0.0
    %318 = vmatpush1.msra.mxu0 %v57
    %319 = vmatprep.subr.mxu0 0.0
    %320 = vmatpush1.msra.mxu0 %v58
    %321 = vmatprep.subr.mxu0 0.0
    %322 = vmatpush1.msra.mxu0 %v59
    %323 = vmatprep.subr.mxu0 0.0
    %324 = vmatpush1.msra.mxu0 %v60
    %325 = vmatprep.subr.mxu0 0.0
    %326 = vmatpush1.msra.mxu0 %v61
    %327 = vmatprep.subr.mxu0 0.0
    %328 = vmatpush1.msra.mxu0 %v62
    %329 = vmatprep.subr.mxu0 0.0
    %330 = vmatpush1.msra.mxu0 %v63
    %331 = vmatprep.subr.mxu0 0.0
    %332 = vmatpush1.msra.mxu0 %v64
    %333 = vmatprep.subr.mxu0 0.0
    %334 = vmatpush1.msra.mxu0 %v65
    %335 = vmatprep.subr.mxu0 0.0
    %336 = vmatpush1.msra.mxu0 %v66
    %337 = vmatprep.subr.mxu0 0.0
    %338 = vmatpush1.msra.mxu0 %v67
    %339 = vmatprep.subr.mxu0 0.0
    %340 = vmatpush1.msra.mxu0 %v68
    %341 = vmatprep.subr.mxu0 0.0
    %342 = vmatpush1.msra.mxu0 %v69
    %343 = vmatprep.subr.mxu0 0.0
    %344 = vmatpush1.msra.mxu0 %v70
    %345 = vmatprep.subr.mxu0 0.0
    %346 = vmatpush1.msra.mxu0 %v71
    %347 = vmatprep.subr.mxu0 0.0
    %348 = vmatpush1.msra.mxu0 %v72
    %349 = vmatprep.subr.mxu0 0.0
    %350 = vmatpush1.msra.mxu0 %v73
    %351 = vmatprep.subr.mxu0 0.0
    %352 = vmatpush1.msra.mxu0 %v74
    %353 = vmatprep.subr.mxu0 0.0
    %354 = vmatpush1.msra.mxu0 %v75
    %355 = vmatprep.subr.mxu0 0.0
    %356 = vmatpush1.msra.mxu0 %v76
    %357 = vmatprep.subr.mxu0 0.0
    %358 = vmatpush1.msra.mxu0 %v77
    %359 = vmatprep.mubr.f32.mxu0 %v44
    %360 = vmatmul.mubr.f32.gmra.mrb[0].mxu0 %v43
    %v361 = vpop.f32.mrb[0].mxu0
    %v362 = vadd.f32 %v292, %v361
    %v363 = vpop.f32.mrb[0].mxu0
    %364 = vdwg.mxu0
    %365 = vmatprep.subr.mxu0 0.0
    %366 = vmatpush1.msra.mxu0 %v78
    %367 = vmatprep.subr.mxu0 0.0
    %368 = vmatpush1.msra.mxu0 %v79
    %369 = vmatprep.subr.mxu0 0.0
    %370 = vmatpush1.msra.mxu0 %v80
    %371 = vmatprep.subr.mxu0 0.0
    %372 = vmatpush1.msra.mxu0 %v81
    %373 = vmatprep.subr.mxu0 0.0
    %374 = vmatpush1.msra.mxu0 %v82
    %375 = vmatprep.subr.mxu0 0.0
    %376 = vmatpush1.msra.mxu0 %v83
    %377 = vmatprep.subr.mxu0 0.0
    %378 = vmatpush1.msra.mxu0 %v84
    %379 = vmatprep.subr.mxu0 0.0
    %380 = vmatpush1.msra.mxu0 %v85
    %381 = vmatprep.subr.mxu0 0.0
    %382 = vmatpush1.msra.mxu0 %v86
    %383 = vmatprep.subr.mxu0 0.0
    %384 = vmatpush1.msra.mxu0 %v87
    %385 = vmatprep.subr.mxu0 0.0
    %386 = vmatpush1.msra.mxu0 %v88
    %387 = vmatprep.subr.mxu0 0.0
    %388 = vmatpush1.msra.mxu0 %v89
    %389 = vmatprep.subr.mxu0 0.0
    %390 = vmatpush1.msra.mxu0 %v90
    %391 = vmatprep.subr.mxu0 0.0
    %392 = vmatpush1.msra.mxu0 %v91
    %393 = vmatprep.subr.mxu0 0.0
    %394 = vmatpush1.msra.mxu0 %v92
    %395 = vmatprep.subr.mxu0 0.0
    %396 = vmatpush1.msra.mxu0 %v93
    %397 = vmatprep.subr.mxu0 0.0
    %398 = vmatpush1.msra.mxu0 0.0
    %399 = vmatprep.subr.mxu0 0.0
    %400 = vmatpush1.msra.mxu0 0.0
    %401 = vmatprep.subr.mxu0 0.0
    %402 = vmatpush1.msra.mxu0 0.0
    %403 = vmatprep.subr.mxu0 0.0
    %404 = vmatpush1.msra.mxu0 0.0
    %405 = vmatprep.subr.mxu0 0.0
    %406 = vmatpush1.msra.mxu0 0.0
    %407 = vmatprep.subr.mxu0 0.0
    %408 = vmatpush1.msra.mxu0 0.0
    %409 = vmatprep.subr.mxu0 0.0
    %410 = vmatpush1.msra.mxu0 0.0
    %411 = vmatprep.subr.mxu0 0.0
    %412 = vmatpush1.msra.mxu0 0.0
    %413 = vmatprep.subr.mxu0 0.0
    %414 = vmatpush1.msra.mxu0 0.0
    %415 = vmatprep.subr.mxu0 0.0
    %416 = vmatpush1.msra.mxu0 0.0
    %417 = vmatprep.subr.mxu0 0.0
    %418 = vmatpush1.msra.mxu0 0.0
    %419 = vmatprep.subr.mxu0 0.0
    %420 = vmatpush1.msra.mxu0 0.0
    %421 = vmatprep.subr.mxu0 0.0
    %422 = vmatpush1.msra.mxu0 0.0
    %423 = vmatprep.subr.mxu0 0.0
    %424 = vmatpush1.msra.mxu0 0.0
    %425 = vmatprep.subr.mxu0 0.0
    %426 = vmatpush1.msra.mxu0 0.0
    %427 = vmatprep.subr.mxu0 0.0
    %428 = vmatpush1.msra.mxu0 0.0
    %429 = vmatprep.mubr.f32.mxu0 0.0
    %430 = vmatmul.mubr.f32.gmra.mrb[0].mxu0 %v45
    %v431 = vpop.f32.mrb[0].mxu0
    %v432 = vadd.f32 %v362, %v431
    %v433 = vpop.f32.mrb[0].mxu0
    %434 = vdwg.mxu0
    %435 = vset.pattern.permute.xlu0 2
    %436 = vperm.xlu0 %435, %v33
    %v437 = vpop.permute.xlu0 %436
    %vm438 = vcmp.eq.s32.totalorder %v437, %v30
    %vm439 = vcmp.eq.s32.totalorder %v437, %v31
    %vm440 = vcmp.eq.s32.totalorder %v437, %v32
    %v441 = vsel %vm438, 1, 0
    %v442 = vsel %vm439, 1, 0
    %v443 = vsel %vm440, 1, 0
    %v444 = vcvt.s32.f32 %v441
    %v445 = vcvt.s32.f32 %v442
    %v446 = vcvt.s32.f32 %v443
    %s447 = scalar_lea.vmem [#allocation2], 768
    %v448 = vld [vmem:[%s447] sm:$0xff]
    %v449 = vld [vmem:[%s447 + $0x8] sm:$0xff]
    %v450 = vld [vmem:[%s447 + $0x10] sm:$0xff]
    %v451 = vld [vmem:[%s447 + $0x18] sm:$0xff]
    %v452 = vld [vmem:[%s447 + $0x20] sm:$0xff]
    %v453 = vld [vmem:[%s447 + $0x28] sm:$0xff]
    %v454 = vld [vmem:[%s447 + $0x30] sm:$0xff]
    %v455 = vld [vmem:[%s447 + $0x38] sm:$0xff]
    %v456 = vld [vmem:[%s447 + $0x40] sm:$0xff]
    %v457 = vld [vmem:[%s447 + $0x48] sm:$0xff]
    %v458 = vld [vmem:[%s447 + $0x50] sm:$0xff]
    %v459 = vld [vmem:[%s447 + $0x58] sm:$0xff]
    %v460 = vld [vmem:[%s447 + $0x60] sm:$0xff]
    %v461 = vld [vmem:[%s447 + $0x68] sm:$0xff]
    %v462 = vld [vmem:[%s447 + $0x70] sm:$0xff]
    %v463 = vld [vmem:[%s447 + $0x78] sm:$0xff]
    %v464 = vld [vmem:[%s447 + $0x80] sm:$0xff]
    %v465 = vld [vmem:[%s447 + $0x88] sm:$0xff]
    %v466 = vld [vmem:[%s447 + $0x90] sm:$0xff]
    %v467 = vld [vmem:[%s447 + $0x98] sm:$0xff]
    %v468 = vld [vmem:[%s447 + $0xa0] sm:$0xff]
    %v469 = vld [vmem:[%s447 + $0xa8] sm:$0xff]
    %v470 = vld [vmem:[%s447 + $0xb0] sm:$0xff]
    %v471 = vld [vmem:[%s447 + $0xb8] sm:$0xff]
    %v472 = vld [vmem:[%s447 + $0xc0] sm:$0xff]
    %v473 = vld [vmem:[%s447 + $0xc8] sm:$0xff]
    %v474 = vld [vmem:[%s447 + $0xd0] sm:$0xff]
    %v475 = vld [vmem:[%s447 + $0xd8] sm:$0xff]
    %v476 = vld [vmem:[%s447 + $0xe0] sm:$0xff]
    %v477 = vld [vmem:[%s447 + $0xe8] sm:$0xff]
    %v478 = vld [vmem:[%s447 + $0xf0] sm:$0xff]
    %v479 = vld [vmem:[%s447 + $0xf8] sm:$0xff]
    %v480 = vld [vmem:[%s447 + $0x100] sm:$0xff]
    %v481 = vld [vmem:[%s447 + $0x108] sm:$0xff]
    %v482 = vld [vmem:[%s447 + $0x110] sm:$0xff]
    %v483 = vld [vmem:[%s447 + $0x118] sm:$0xff]
    %v484 = vld [vmem:[%s447 + $0x120] sm:$0xff]
    %v485 = vld [vmem:[%s447 + $0x128] sm:$0xff]
    %v486 = vld [vmem:[%s447 + $0x130] sm:$0xff]
    %v487 = vld [vmem:[%s447 + $0x138] sm:$0xff]
    %v488 = vld [vmem:[%s447 + $0x140] sm:$0xff]
    %v489 = vld [vmem:[%s447 + $0x148] sm:$0xff]
    %v490 = vld [vmem:[%s447 + $0x150] sm:$0xff]
    %v491 = vld [vmem:[%s447 + $0x158] sm:$0xff]
    %v492 = vld [vmem:[%s447 + $0x160] sm:$0xff]
    %v493 = vld [vmem:[%s447 + $0x168] sm:$0xff]
    %v494 = vld [vmem:[%s447 + $0x170] sm:$0xff]
    %v495 = vld [vmem:[%s447 + $0x178] sm:$0xff]
    %496 = vmatprep.subr.mxu0 0.0
    %497 = vmatpush1.msra.mxu0 %v448
    %498 = vmatprep.subr.mxu0 0.0
    %499 = vmatpush1.msra.mxu0 %v449
    %500 = vmatprep.subr.mxu0 0.0
    %501 = vmatpush1.msra.mxu0 %v450
    %502 = vmatprep.subr.mxu0 0.0
    %503 = vmatpush1.msra.mxu0 %v451
    %504 = vmatprep.subr.mxu0 0.0
    %505 = vmatpush1.msra.mxu0 %v452
    %506 = vmatprep.subr.mxu0 0.0
    %507 = vmatpush1.msra.mxu0 %v453
    %508 = vmatprep.subr.mxu0 0.0
    %509 = vmatpush1.msra.mxu0 %v454
    %510 = vmatprep.subr.mxu0 0.0
    %511 = vmatpush1.msra.mxu0 %v455
    %512 = vmatprep.subr.mxu0 0.0
    %513 = vmatpush1.msra.mxu0 %v456
    %514 = vmatprep.subr.mxu0 0.0
    %515 = vmatpush1.msra.mxu0 %v457
    %516 = vmatprep.subr.mxu0 0.0
    %517 = vmatpush1.msra.mxu0 %v458
    %518 = vmatprep.subr.mxu0 0.0
    %519 = vmatpush1.msra.mxu0 %v459
    %520 = vmatprep.subr.mxu0 0.0
    %521 = vmatpush1.msra.mxu0 %v460
    %522 = vmatprep.subr.mxu0 0.0
    %523 = vmatpush1.msra.mxu0 %v461
    %524 = vmatprep.subr.mxu0 0.0
    %525 = vmatpush1.msra.mxu0 %v462
    %526 = vmatprep.subr.mxu0 0.0
    %527 = vmatpush1.msra.mxu0 %v463
    %528 = vmatprep.subr.mxu0 0.0
    %529 = vmatpush1.msra.mxu0 %v464
    %530 = vmatprep.subr.mxu0 0.0
    %531 = vmatpush1.msra.mxu0 %v465
    %532 = vmatprep.subr.mxu0 0.0
    %533 = vmatpush1.msra.mxu0 %v466
    %534 = vmatprep.subr.mxu0 0.0
    %535 = vmatpush1.msra.mxu0 %v467
    %536 = vmatprep.subr.mxu0 0.0
    %537 = vmatpush1.msra.mxu0 %v468
    %538 = vmatprep.subr.mxu0 0.0
    %539 = vmatpush1.msra.mxu0 %v469
    %540 = vmatprep.subr.mxu0 0.0
    %541 = vmatpush1.msra.mxu0 %v470
    %542 = vmatprep.subr.mxu0 0.0
    %543 = vmatpush1.msra.mxu0 %v471
    %544 = vmatprep.subr.mxu0 0.0
    %545 = vmatpush1.msra.mxu0 %v472
    %546 = vmatprep.subr.mxu0 0.0
    %547 = vmatpush1.msra.mxu0 %v473
    %548 = vmatprep.subr.mxu0 0.0
    %549 = vmatpush1.msra.mxu0 %v474
    %550 = vmatprep.subr.mxu0 0.0
    %551 = vmatpush1.msra.mxu0 %v475
    %552 = vmatprep.subr.mxu0 0.0
    %553 = vmatpush1.msra.mxu0 %v476
    %554 = vmatprep.subr.mxu0 0.0
    %555 = vmatpush1.msra.mxu0 %v477
    %556 = vmatprep.subr.mxu0 0.0
    %557 = vmatpush1.msra.mxu0 %v478
    %558 = vmatprep.subr.mxu0 0.0
    %559 = vmatpush1.msra.mxu0 %v479
    %560 = vmatprep.mubr.f32.mxu0 %v445
    %561 = vmatmul.mubr.f32.gmra.mrb[0].mxu0 %v444
    %v562 = vpop.f32.mrb[0].mxu0
    %v563 = vadd.f32 0.0, %v562
    %v564 = vpop.f32.mrb[0].mxu0
    %565 = vdwg.mxu0
    %566 = vmatprep.subr.mxu0 0.0
    %567 = vmatpush1.msra.mxu0 %v480
    %568 = vmatprep.subr.mxu0 0.0
    %569 = vmatpush1.msra.mxu0 %v481
    %570 = vmatprep.subr.mxu0 0.0
    %571 = vmatpush1.msra.mxu0 %v482
    %572 = vmatprep.subr.mxu0 0.0
    %573 = vmatpush1.msra.mxu0 %v483
    %574 = vmatprep.subr.mxu0 0.0
    %575 = vmatpush1.msra.mxu0 %v484
    %576 = vmatprep.subr.mxu0 0.0
    %577 = vmatpush1.msra.mxu0 %v485
    %578 = vmatprep.subr.mxu0 0.0
    %579 = vmatpush1.msra.mxu0 %v486
    %580 = vmatprep.subr.mxu0 0.0
    %581 = vmatpush1.msra.mxu0 %v487
    %582 = vmatprep.subr.mxu0 0.0
    %583 = vmatpush1.msra.mxu0 %v488
    %584 = vmatprep.subr.mxu0 0.0
    %585 = vmatpush1.msra.mxu0 %v489
    %586 = vmatprep.subr.mxu0 0.0
    %587 = vmatpush1.msra.mxu0 %v490
    %588 = vmatprep.subr.mxu0 0.0
    %589 = vmatpush1.msra.mxu0 %v491
    %590 = vmatprep.subr.mxu0 0.0
    %591 = vmatpush1.msra.mxu0 %v492
    %592 = vmatprep.subr.mxu0 0.0
    %593 = vmatpush1.msra.mxu0 %v493
    %594 = vmatprep.subr.mxu0 0.0
    %595 = vmatpush1.msra.mxu0 %v494
    %596 = vmatprep.subr.mxu0 0.0
    %597 = vmatpush1.msra.mxu0 %v495
    %598 = vmatprep.subr.mxu0 0.0
    %599 = vmatpush1.msra.mxu0 0.0
    %600 = vmatprep.subr.mxu0 0.0
    %601 = vmatpush1.msra.mxu0 0.0
    %602 = vmatprep.subr.mxu0 0.0
    %603 = vmatpush1.msra.mxu0 0.0
    %604 = vmatprep.subr.mxu0 0.0
    %605 = vmatpush1.msra.mxu0 0.0
    %606 = vmatprep.subr.mxu0 0.0
    %607 = vmatpush1.msra.mxu0 0.0
    %608 = vmatprep.subr.mxu0 0.0
    %609 = vmatpush1.msra.mxu0 0.0
    %610 = vmatprep.subr.mxu0 0.0
    %611 = vmatpush1.msra.mxu0 0.0
    %612 = vmatprep.subr.mxu0 0.0
    %613 = vmatpush1.msra.mxu0 0.0
    %614 = vmatprep.subr.mxu0 0.0
    %615 = vmatpush1.msra.mxu0 0.0
    %616 = vmatprep.subr.mxu0 0.0
    %617 = vmatpush1.msra.mxu0 0.0
    %618 = vmatprep.subr.mxu0 0.0
    %619 = vmatpush1.msra.mxu0 0.0
    %620 = vmatprep.subr.mxu0 0.0
    %621 = vmatpush1.msra.mxu0 0.0
    %622 = vmatprep.subr.mxu0 0.0
    %623 = vmatpush1.msra.mxu0 0.0
    %624 = vmatprep.subr.mxu0 0.0
    %625 = vmatpush1.msra.mxu0 0.0
    %626 = vmatprep.subr.mxu0 0.0
    %627 = vmatpush1.msra.mxu0 0.0
    %628 = vmatprep.subr.mxu0 0.0
    %629 = vmatpush1.msra.mxu0 0.0
    %630 = vmatprep.mubr.f32.mxu0 0.0
    %631 = vmatmul.mubr.f32.gmra.mrb[0].mxu0 %v446
    %v632 = vpop.f32.mrb[0].mxu0
    %v633 = vadd.f32 %v563, %v632
    %v634 = vpop.f32.mrb[0].mxu0
    %635 = vdwg.mxu0
    %v636 = vadd.f32 %v432, %v633
    %637 = vset.pattern.permute.xlu0 3
    %638 = vperm.xlu0 %637, %v33
    %v639 = vpop.permute.xlu0 %638
    %vm640 = vcmp.eq.s32.totalorder %v639, %v30
    %vm641 = vcmp.eq.s32.totalorder %v639, %v31
    %vm642 = vcmp.eq.s32.totalorder %v639, %v32
    %v643 = vsel %vm640, 1, 0
    %v644 = vsel %vm641, 1, 0
    %v645 = vsel %vm642, 1, 0
    %v646 = vcvt.s32.f32 %v643
    %v647 = vcvt.s32.f32 %v644
    %v648 = vcvt.s32.f32 %v645
    %s649 = scalar_lea.vmem [#allocation2], 1152
    %v650 = vld [vmem:[%s649] sm:$0xff]
    %v651 = vld [vmem:[%s649 + $0x8] sm:$0xff]
    %v652 = vld [vmem:[%s649 + $0x10] sm:$0xff]
    %v653 = vld [vmem:[%s649 + $0x18] sm:$0xff]
    %v654 = vld [vmem:[%s649 + $0x20] sm:$0xff]
    %v655 = vld [vmem:[%s649 + $0x28] sm:$0xff]
    %v656 = vld [vmem:[%s649 + $0x30] sm:$0xff]
    %v657 = vld [vmem:[%s649 + $0x38] sm:$0xff]
    %v658 = vld [vmem:[%s649 + $0x40] sm:$0xff]
    %v659 = vld [vmem:[%s649 + $0x48] sm:$0xff]
    %v660 = vld [vmem:[%s649 + $0x50] sm:$0xff]
    %v661 = vld [vmem:[%s649 + $0x58] sm:$0xff]
    %v662 = vld [vmem:[%s649 + $0x60] sm:$0xff]
    %v663 = vld [vmem:[%s649 + $0x68] sm:$0xff]
    %v664 = vld [vmem:[%s649 + $0x70] sm:$0xff]
    %v665 = vld [vmem:[%s649 + $0x78] sm:$0xff]
    %v666 = vld [vmem:[%s649 + $0x80] sm:$0xff]
    %v667 = vld [vmem:[%s649 + $0x88] sm:$0xff]
    %v668 = vld [vmem:[%s649 + $0x90] sm:$0xff]
    %v669 = vld [vmem:[%s649 + $0x98] sm:$0xff]
    %v670 = vld [vmem:[%s649 + $0xa0] sm:$0xff]
    %v671 = vld [vmem:[%s649 + $0xa8] sm:$0xff]
    %v672 = vld [vmem:[%s649 + $0xb0] sm:$0xff]
    %v673 = vld [vmem:[%s649 + $0xb8] sm:$0xff]
    %v674 = vld [vmem:[%s649 + $0xc0] sm:$0xff]
    %v675 = vld [vmem:[%s649 + $0xc8] sm:$0xff]
    %v676 = vld [vmem:[%s649 + $0xd0] sm:$0xff]
    %v677 = vld [vmem:[%s649 + $0xd8] sm:$0xff]
    %v678 = vld [vmem:[%s649 + $0xe0] sm:$0xff]
    %v679 = vld [vmem:[%s649 + $0xe8] sm:$0xff]
    %v680 = vld [vmem:[%s649 + $0xf0] sm:$0xff]
    %v681 = vld [vmem:[%s649 + $0xf8] sm:$0xff]
    %v682 = vld [vmem:[%s649 + $0x100] sm:$0xff]
    %v683 = vld [vmem:[%s649 + $0x108] sm:$0xff]
    %v684 = vld [vmem:[%s649 + $0x110] sm:$0xff]
    %v685 = vld [vmem:[%s649 + $0x118] sm:$0xff]
    %v686 = vld [vmem:[%s649 + $0x120] sm:$0xff]
    %v687 = vld [vmem:[%s649 + $0x128] sm:$0xff]
    %v688 = vld [vmem:[%s649 + $0x130] sm:$0xff]
    %v689 = vld [vmem:[%s649 + $0x138] sm:$0xff]
    %v690 = vld [vmem:[%s649 + $0x140] sm:$0xff]
    %v691 = vld [vmem:[%s649 + $0x148] sm:$0xff]
    %v692 = vld [vmem:[%s649 + $0x150] sm:$0xff]
    %v693 = vld [vmem:[%s649 + $0x158] sm:$0xff]
    %v694 = vld [vmem:[%s649 + $0x160] sm:$0xff]
    %v695 = vld [vmem:[%s649 + $0x168] sm:$0xff]
    %v696 = vld [vmem:[%s649 + $0x170] sm:$0xff]
    %v697 = vld [vmem:[%s649 + $0x178] sm:$0xff]
    %698 = vmatprep.subr.mxu0 0.0
    %699 = vmatpush1.msra.mxu0 %v650
    %700 = vmatprep.subr.mxu0 0.0
    %701 = vmatpush1.msra.mxu0 %v651
    %702 = vmatprep.subr.mxu0 0.0
    %703 = vmatpush1.msra.mxu0 %v652
    %704 = vmatprep.subr.mxu0 0.0
    %705 = vmatpush1.msra.mxu0 %v653
    %706 = vmatprep.subr.mxu0 0.0
    %707 = vmatpush1.msra.mxu0 %v654
    %708 = vmatprep.subr.mxu0 0.0
    %709 = vmatpush1.msra.mxu0 %v655
    %710 = vmatprep.subr.mxu0 0.0
    %711 = vmatpush1.msra.mxu0 %v656
    %712 = vmatprep.subr.mxu0 0.0
    %713 = vmatpush1.msra.mxu0 %v657
    %714 = vmatprep.subr.mxu0 0.0
    %715 = vmatpush1.msra.mxu0 %v658
    %716 = vmatprep.subr.mxu0 0.0
    %717 = vmatpush1.msra.mxu0 %v659
    %718 = vmatprep.subr.mxu0 0.0
    %719 = vmatpush1.msra.mxu0 %v660
    %720 = vmatprep.subr.mxu0 0.0
    %721 = vmatpush1.msra.mxu0 %v661
    %722 = vmatprep.subr.mxu0 0.0
    %723 = vmatpush1.msra.mxu0 %v662
    %724 = vmatprep.subr.mxu0 0.0
    %725 = vmatpush1.msra.mxu0 %v663
    %726 = vmatprep.subr.mxu0 0.0
    %727 = vmatpush1.msra.mxu0 %v664
    %728 = vmatprep.subr.mxu0 0.0
    %729 = vmatpush1.msra.mxu0 %v665
    %730 = vmatprep.subr.mxu0 0.0
    %731 = vmatpush1.msra.mxu0 %v666
    %732 = vmatprep.subr.mxu0 0.0
    %733 = vmatpush1.msra.mxu0 %v667
    %734 = vmatprep.subr.mxu0 0.0
    %735 = vmatpush1.msra.mxu0 %v668
    %736 = vmatprep.subr.mxu0 0.0
    %737 = vmatpush1.msra.mxu0 %v669
    %738 = vmatprep.subr.mxu0 0.0
    %739 = vmatpush1.msra.mxu0 %v670
    %740 = vmatprep.subr.mxu0 0.0
    %741 = vmatpush1.msra.mxu0 %v671
    %742 = vmatprep.subr.mxu0 0.0
    %743 = vmatpush1.msra.mxu0 %v672
    %744 = vmatprep.subr.mxu0 0.0
    %745 = vmatpush1.msra.mxu0 %v673
    %746 = vmatprep.subr.mxu0 0.0
    %747 = vmatpush1.msra.mxu0 %v674
    %748 = vmatprep.subr.mxu0 0.0
    %749 = vmatpush1.msra.mxu0 %v675
    %750 = vmatprep.subr.mxu0 0.0
    %751 = vmatpush1.msra.mxu0 %v676
    %752 = vmatprep.subr.mxu0 0.0
    %753 = vmatpush1.msra.mxu0 %v677
    %754 = vmatprep.subr.mxu0 0.0
    %755 = vmatpush1.msra.mxu0 %v678
    %756 = vmatprep.subr.mxu0 0.0
    %757 = vmatpush1.msra.mxu0 %v679
    %758 = vmatprep.subr.mxu0 0.0
    %759 = vmatpush1.msra.mxu0 %v680
    %760 = vmatprep.subr.mxu0 0.0
    %761 = vmatpush1.msra.mxu0 %v681
    %762 = vmatprep.mubr.f32.mxu0 %v647
    %763 = vmatmul.mubr.f32.gmra.mrb[0].mxu0 %v646
    %v764 = vpop.f32.mrb[0].mxu0
    %v765 = vadd.f32 0.0, %v764
    %v766 = vpop.f32.mrb[0].mxu0
    %767 = vdwg.mxu0
    %768 = vmatprep.subr.mxu0 0.0
    %769 = vmatpush1.msra.mxu0 %v682
    %770 = vmatprep.subr.mxu0 0.0
    %771 = vmatpush1.msra.mxu0 %v683
    %772 = vmatprep.subr.mxu0 0.0
    %773 = vmatpush1.msra.mxu0 %v684
    %774 = vmatprep.subr.mxu0 0.0
    %775 = vmatpush1.msra.mxu0 %v685
    %776 = vmatprep.subr.mxu0 0.0
    %777 = vmatpush1.msra.mxu0 %v686
    %778 = vmatprep.subr.mxu0 0.0
    %779 = vmatpush1.msra.mxu0 %v687
    %780 = vmatprep.subr.mxu0 0.0
    %781 = vmatpush1.msra.mxu0 %v688
    %782 = vmatprep.subr.mxu0 0.0
    %783 = vmatpush1.msra.mxu0 %v689
    %784 = vmatprep.subr.mxu0 0.0
    %785 = vmatpush1.msra.mxu0 %v690
    %786 = vmatprep.subr.mxu0 0.0
    %787 = vmatpush1.msra.mxu0 %v691
    %788 = vmatprep.subr.mxu0 0.0
    %789 = vmatpush1.msra.mxu0 %v692
    %790 = vmatprep.subr.mxu0 0.0
    %791 = vmatpush1.msra.mxu0 %v693
    %792 = vmatprep.subr.mxu0 0.0
    %793 = vmatpush1.msra.mxu0 %v694
    %794 = vmatprep.subr.mxu0 0.0
    %795 = vmatpush1.msra.mxu0 %v695
    %796 = vmatprep.subr.mxu0 0.0
    %797 = vmatpush1.msra.mxu0 %v696
    %798 = vmatprep.subr.mxu0 0.0
    %799 = vmatpush1.msra.mxu0 %v697
    %800 = vmatprep.subr.mxu0 0.0
    %801 = vmatpush1.msra.mxu0 0.0
    %802 = vmatprep.subr.mxu0 0.0
    %803 = vmatpush1.msra.mxu0 0.0
    %804 = vmatprep.subr.mxu0 0.0
    %805 = vmatpush1.msra.mxu0 0.0
    %806 = vmatprep.subr.mxu0 0.0
    %807 = vmatpush1.msra.mxu0 0.0
    %808 = vmatprep.subr.mxu0 0.0
    %809 = vmatpush1.msra.mxu0 0.0
    %810 = vmatprep.subr.mxu0 0.0
    %811 = vmatpush1.msra.mxu0 0.0
    %812 = vmatprep.subr.mxu0 0.0
    %813 = vmatpush1.msra.mxu0 0.0
    %814 = vmatprep.subr.mxu0 0.0
    %815 = vmatpush1.msra.mxu0 0.0
    %816 = vmatprep.subr.mxu0 0.0
    %817 = vmatpush1.msra.mxu0 0.0
    %818 = vmatprep.subr.mxu0 0.0
    %819 = vmatpush1.msra.mxu0 0.0
    %820 = vmatprep.subr.mxu0 0.0
    %821 = vmatpush1.msra.mxu0 0.0
    %822 = vmatprep.subr.mxu0 0.0
    %823 = vmatpush1.msra.mxu0 0.0
    %824 = vmatprep.subr.mxu0 0.0
    %825 = vmatpush1.msra.mxu0 0.0
    %826 = vmatprep.subr.mxu0 0.0
    %827 = vmatpush1.msra.mxu0 0.0
    %828 = vmatprep.subr.mxu0 0.0
    %829 = vmatpush1.msra.mxu0 0.0
    %830 = vmatprep.subr.mxu0 0.0
    %831 = vmatpush1.msra.mxu0 0.0
    %832 = vmatprep.mubr.f32.mxu0 0.0
    %833 = vmatmul.mubr.f32.gmra.mrb[0].mxu0 %v648
    %v834 = vpop.f32.mrb[0].mxu0
    %v835 = vadd.f32 %v765, %v834
    %v836 = vpop.f32.mrb[0].mxu0
    %837 = vdwg.mxu0
    %v838 = vadd.f32 %v636, %v835
    %v839 = vld [vmem:[%s2] sm:$0x1]
    %v841 = vlaneseq
    %v842 = vshrl.u32 %v841, 7
    %v843 = vsub.s32 0, %v842
    %v844 = vrot.slane %v839, %v843
    %v846 = vadd.f32 %v838, %v844
    %847 = vst [vmem:[#allocation5] sm:$0xff] %v846
    // Predicated region
    $region18: #{tpu_custom_call.1} parent=1 // pred_check
      _
    $region19: #{tpu_custom_call.1} parent=1 // pred_check_branch
      %849 = sbr.rel (0) target = $region21
    $region20: #{tpu_custom_call.1} parent=1 // pred_region
      %s851 = ssub.s32 128, 128
      %852 = vsyncadd [#allocation4], %s851
      %s854 = sshll.u32 [#allocation5], 4
      %s855 = int_to_ptr.vmem [resolvable:$true] %s854
      %857 = dma.vmem_to_hbm [thread:$0]  %s855, 128, %s3, [#allocation4]
    $region21: #{tpu_custom_call.1} parent=1 // pred_fallthru
      _
    // Predicated region
    $region22: #{tpu_custom_call.1} parent=1 // pred_check
      _
    $region23: #{tpu_custom_call.1} parent=1 // pred_check_branch
      %859 = sbr.rel (0) target = $region25
    $region24: #{tpu_custom_call.1} parent=1 // pred_region
      %860 = dma.done [#allocation4], 128
    $region25: #{tpu_custom_call.1} parent=1 // pred_fallthru
      _
    %861 = vsyncpa [#allocation3], 1
    %862 = vsyncpa [#allocation4], 1

</llo_original>
